<compile_context>
chip_gen: v5e
topology: v5e:2x2
jax: 0.10.0
libtpu: 0.0.40
codegen_flags: <defaults>
</compile_context>

<pallas_src>
import math
import functools

import jax
import jax.numpy as jnp
from jax.experimental import pallas as pl
from jax.experimental.pallas import tpu as pltpu


# ----------------------------------------------------------------------------
# Fused kernel: one (batch, q-tile) step does the full forward for that slice.
# ----------------------------------------------------------------------------
def _fused_mma_kernel(x_ref, ctx_ref, wq_ref, wkv_ref, wout_ref, bout_ref, *rest,
                      heads, dim_head, scale, has_mask, compute_dtype):
    if has_mask:
        mask_ref, o_ref = rest
    else:
        (o_ref,) = rest

    inner = heads * dim_head
    cd = compute_dtype

    x = x_ref[0].astype(cd)            # (tq, Dq)
    ctx = ctx_ref[0].astype(cd)        # (Nk, Dc)

    # --- projections (MXU, f32 accumulation; to_q / to_kv_* have no bias) ---
    q = jnp.dot(x, wq_ref[...].astype(cd),
                preferred_element_type=jnp.float32)            # (tq, inner) f32
    kv = jnp.dot(ctx, wkv_ref[...].astype(cd),
                 preferred_element_type=jnp.float32)           # (Nk, 2*inner) f32

    # Fold the attention scale into q once: cheaper than scaling (tq, Nk)
    # score matrices per head when Nk > dim_head.
    q = q * scale

    k = kv[:, :inner]                                          # (Nk, inner)
    v = kv[:, inner:]                                          # (Nk, inner)

    q_cd = q.astype(cd)
    k_cd = k.astype(cd)
    v_cd = v.astype(cd)

    if has_mask:
        keep = mask_ref[0] != 0                                # (1, Nk) bool
        neg = -float(jnp.finfo(jnp.float32).max)

    # --- per-head attention; heads are contiguous along lanes, so head
    #     slicing is free (no transpose / relayout) -------------------------
    head_outs = []
    for h in range(heads):                                     # static unroll
        sl = slice(h * dim_head, (h + 1) * dim_head)
        qh = q_cd[:, sl]                                       # (tq, d)
        kh = k_cd[:, sl]                                       # (Nk, d)
        vh = v_cd[:, sl]                                       # (Nk, d)

        sim = jax.lax.dot_general(                             # q @ k^T
            qh, kh, (((1,), (1,)), ((), ())),
            preferred_element_type=jnp.float32)                # (tq, Nk) f32
        if has_mask:
            sim = jnp.where(keep, sim, neg)

        # numerically stable softmax, normalisation deferred past PV matmul
        m = jnp.max(sim, axis=-1, keepdims=True)               # (tq, 1)
        p = jnp.exp(sim - m)                                   # (tq, Nk) f32
        l = jnp.sum(p, axis=-1, keepdims=True)                 # (tq, 1)

        pv = jnp.dot(p.astype(cd), vh,
                     preferred_element_type=jnp.float32)       # (tq, d) f32
        head_outs.append(pv * pl.reciprocal(l, approx=True))

    attn_out = jnp.concatenate(head_outs, axis=-1)             # (tq, inner) f32

    # --- output projection (to_out has a bias) ----------------------------
    out = jnp.dot(attn_out.astype(cd), wout_ref[...].astype(cd),
                  preferred_element_type=jnp.float32)          # (tq, Dq) f32
    out = out + bout_ref[...]
    o_ref[0] = out.astype(o_ref.dtype)


def _pick_q_tile(n, max_tile=512):
    """Largest query tile <= max_tile that divides n (prefer sublane multiples)."""
    if n <= max_tile:
        return n
    for t in range(max_tile, 7, -1):
        if n % t == 0 and t % 8 == 0:
            return t
    return n


# ----------------------------------------------------------------------------
# Wrapper
# ----------------------------------------------------------------------------
def multimodal_attention(params, x, context=None, mask=None, modality="image",
                         heads=8, dim_head=64,
                         compute_dtype=jnp.bfloat16, max_q_tile=512):
    B, Nq, Dq = x.shape
    if context is None:
        context = x
    _, Nk, Dc = context.shape
    inner = heads * dim_head
    scale = dim_head ** (-0.5)

    w_q = params["w_q"]
    w_kv = params["w_kv_image"] if modality == "image" else params["w_kv_text"]
    w_out = params["w_out"]
    b_out = params["b_out"].reshape(1, Dq)

    tq = _pick_q_tile(Nq, max_q_tile)
    assert Nq % tq == 0
    n_qt = Nq // tq

    has_mask = mask is not None

    inputs = [x, context, w_q, w_kv, w_out, b_out]
    in_specs = [
        pl.BlockSpec((1, tq, Dq), lambda b, i: (b, i, 0)),       # x (q-tiled)
        pl.BlockSpec((1, Nk, Dc), lambda b, i: (b, 0, 0)),       # context
        pl.BlockSpec((Dq, inner), lambda b, i: (0, 0)),          # w_q (resident)
        pl.BlockSpec((Dc, 2 * inner), lambda b, i: (0, 0)),      # w_kv (resident)
        pl.BlockSpec((inner, Dq), lambda b, i: (0, 0)),          # w_out (resident)
        pl.BlockSpec((1, Dq), lambda b, i: (0, 0)),              # b_out (resident)
    ]
    if has_mask:
        # PyTorch: rearrange(mask, 'b ... -> b (...)') -> (B, Nk) keep-mask
        mask_i32 = mask.reshape(B, -1).astype(jnp.int32).reshape(B, 1, Nk)
        inputs.append(mask_i32)
        in_specs.append(pl.BlockSpec((1, 1, Nk), lambda b, i: (b, 0, 0)))

    kern = functools.partial(
        _fused_mma_kernel, heads=heads, dim_head=dim_head, scale=scale,
        has_mask=has_mask, compute_dtype=compute_dtype)

    # Advisory cost estimate (flops of the 4 matmuls, exp/recip counts, HBM bytes).
    flops = int(B * (2 * Nq * Dq * inner
                     + 2 * Nk * Dc * (2 * inner)
                     + heads * 4 * Nq * Nk * dim_head
                     + 2 * Nq * inner * Dq))
    transcendentals = int(B * heads * Nq * (Nk + 1))
    bytes_accessed = int(sum(int(a.size) * a.dtype.itemsize for a in inputs)
                         + B * Nq * Dq * x.dtype.itemsize)
    cost = pl.CostEstimate(flops=flops, transcendentals=transcendentals,
                           bytes_accessed=bytes_accessed)

    out = pl.pallas_call(
        kern,
        out_shape=jax.ShapeDtypeStruct((B, Nq, Dq), x.dtype),
        grid=(B, n_qt),
        in_specs=in_specs,
        out_specs=pl.BlockSpec((1, tq, Dq), lambda b, i: (b, i, 0)),
        compiler_params=pltpu.CompilerParams(
            dimension_semantics=("parallel", "parallel")),
        cost_estimate=cost,
    )(*inputs)
    return out


# ----------------------------------------------------------------------------
# Parameter init (deterministic, mimics nn.Linear default uniform init)
# ----------------------------------------------------------------------------
def init_params(key, query_dim, image_context_dim, text_context_dim, heads, dim_head):
    inner = heads * dim_head
    ks = jax.random.split(key, 5)

    def lin_w(k, fan_in, fan_out):
        bound = 1.0 / math.sqrt(fan_in)
        return jax.random.uniform(k, (fan_in, fan_out), jnp.float32, -bound, bound)

    b_bound = 1.0 / math.sqrt(inner)
    return {
        "w_q": lin_w(ks[0], query_dim, inner),                     # to_q (no bias)
        "w_kv_image": lin_w(ks[1], image_context_dim, inner * 2),  # to_kv_image (no bias)
        "w_kv_text": lin_w(ks[2], text_context_dim, inner * 2),    # to_kv_text (no bias)
        "w_out": lin_w(ks[3], inner, query_dim),                   # to_out weight
        "b_out": jax.random.uniform(ks[4], (query_dim,), jnp.float32, -b_bound, b_bound),
    }


# ----------------------------------------------------------------------------
# Pure-JAX reference (for correctness check)
# ----------------------------------------------------------------------------
def reference(params, x, context, mask, modality, heads, dim_head):
    B, Nq, Dq = x.shape
    _, Nk, Dc = context.shape
    inner = heads * dim_head
    scale = dim_head ** (-0.5)

    q = x @ params["w_q"]
    w_kv = params["w_kv_image"] if modality == "image" else params["w_kv_text"]
    kv = context @ w_kv
    k, v = kv[..., :inner], kv[..., inner:]

    def split(t, n):
        return t.reshape(B, n, heads, dim_head).transpose(0, 2, 1, 3)

    qh, kh, vh = split(q, Nq), split(k, Nk), split(v, Nk)
    sim = jnp.einsum("bhid,bhjd->bhij", qh, kh) * scale
    if mask is not None:
        keep = mask.reshape(B, -1)[:, None, None, :]            # (B,1,1,Nk)
        sim = jnp.where(keep, sim, -jnp.finfo(sim.dtype).max)
    attn = jax.nn.softmax(sim, axis=-1)
    out = jnp.einsum("bhij,bhjd->bhid", attn, vh)
    out = out.transpose(0, 2, 1, 3).reshape(B, Nq, inner)
    return out @ params["w_out"] + params["b_out"]


# ----------------------------------------------------------------------------
if __name__ == "__main__":
    # Small shapes consistent with the module.
    B, Nq, Nk = 2, 8, 8
    query_dim, image_context_dim, text_context_dim = 32, 48, 40
    heads, dim_head = 4, 16

    key = jax.random.PRNGKey(0)
    k_params, k_x, k_img, k_txt = jax.random.split(key, 4)

    params = init_params(k_params, query_dim, image_context_dim,
                         text_context_dim, heads, dim_head)
    x = jax.random.normal(k_x, (B, Nq, query_dim), jnp.float32)
    ctx_img = jax.random.normal(k_img, (B, Nk, image_context_dim), jnp.float32)
    ctx_txt = jax.random.normal(k_txt, (B, Nk, text_context_dim), jnp.float32)
    mask = jnp.arange(Nk)[None, :] < jnp.array([[5], [7]])       # (B, Nk) bool

    # 1) image modality, no mask, bf16 MXU operands (perf path)
    out = multimodal_attention(params, x, context=ctx_img, modality="image",
                               heads=heads, dim_head=dim_head)
    out = jax.block_until_ready(out)
    ref = reference(params, x, ctx_img, None, "image", heads, dim_head)
    assert out.shape == (B, Nq, query_dim)
    assert jnp.allclose(out, ref, atol=5e-2, rtol=5e-2), "bf16 path mismatch"

    # 2) image modality, no mask, f32 compute (accuracy check)
    out32 = multimodal_attention(params, x, context=ctx_img, modality="image",
                                 heads=heads, dim_head=dim_head,
                                 compute_dtype=jnp.float32)
    out32 = jax.block_until_ready(out32)
    assert jnp.allclose(out32, ref, atol=2e-2, rtol=2e-2), "f32 path mismatch"

    # 3) image modality with mask, bf16
    out_m = multimodal_attention(params, x, context=ctx_img, mask=mask,
                                 modality="image", heads=heads, dim_head=dim_head)
    out_m = jax.block_until_ready(out_m)
    ref_m = reference(params, x, ctx_img, mask, "image", heads, dim_head)
    assert jnp.allclose(out_m, ref_m, atol=5e-2, rtol=5e-2), "masked path mismatch"

    # 4) text modality, bf16
    out_t = multimodal_attention(params, x, context=ctx_txt, modality="text",
                                 heads=heads, dim_head=dim_head)
    out_t = jax.block_until_ready(out_t)
    ref_t = reference(params, x, ctx_txt, None, "text", heads, dim_head)
    assert jnp.allclose(out_t, ref_t, atol=5e-2, rtol=5e-2), "text path mismatch"

    print("KERNEL_OK")
</pallas_src>

<mosaic_0001>
module attributes {stable_mosaic.version = 11 : i64} {
  func.func @_fused_mma_kernel(%arg0: i32, %arg1: i32, %arg2: memref<1x8x32xf32, #tpu.memory_space<vmem>>, %arg3: memref<1x8x48xf32, #tpu.memory_space<vmem>>, %arg4: memref<32x64xf32, #tpu.memory_space<vmem>>, %arg5: memref<48x128xf32, #tpu.memory_space<vmem>>, %arg6: memref<64x32xf32, #tpu.memory_space<vmem>>, %arg7: memref<1x32xf32, #tpu.memory_space<vmem>>, %arg8: memref<1x8x32xf32, #tpu.memory_space<vmem>>) attributes {dimension_semantics = [#tpu.dimension_semantics<parallel>, #tpu.dimension_semantics<parallel>], iteration_bounds = array<i64: 2, 1>, scalar_prefetch = 0 : i64, scratch_operands = 0 : i64, tpu.core_type = #tpu.core_type<tc>, window_params = [{transform_indices = @transform_0, window_bounds = array<i64: 1, 8, 32>}, {transform_indices = @transform_1, window_bounds = array<i64: 1, 8, 48>}, {pipeline_mode = #tpu.pipeline_mode<synchronous>, transform_indices = @transform_2, window_bounds = array<i64: 32, 64>}, {pipeline_mode = #tpu.pipeline_mode<synchronous>, transform_indices = @transform_3, window_bounds = array<i64: 48, 128>}, {pipeline_mode = #tpu.pipeline_mode<synchronous>, transform_indices = @transform_4, window_bounds = array<i64: 64, 32>}, {pipeline_mode = #tpu.pipeline_mode<synchronous>, transform_indices = @transform_5, window_bounds = array<i64: 1, 32>}, {transform_indices = @transform_6, window_bounds = array<i64: 1, 8, 32>}]} {
    %c0 = arith.constant 0 : index
    %c0_0 = arith.constant 0 : index
    %c0_1 = arith.constant 0 : index
    %0 = vector.load %arg2[%c0, %c0_0, %c0_1] : memref<1x8x32xf32, #tpu.memory_space<vmem>>, vector<1x8x32xf32>
    %1 = vector.shape_cast %0 : vector<1x8x32xf32> to vector<8x32xf32>
    %2 = arith.truncf %1 : vector<8x32xf32> to vector<8x32xbf16>
    %c0_2 = arith.constant 0 : index
    %c0_3 = arith.constant 0 : index
    %c0_4 = arith.constant 0 : index
    %3 = vector.load %arg3[%c0_2, %c0_3, %c0_4] : memref<1x8x48xf32, #tpu.memory_space<vmem>>, vector<1x8x48xf32>
    %4 = vector.shape_cast %3 : vector<1x8x48xf32> to vector<8x48xf32>
    %5 = arith.truncf %4 : vector<8x48xf32> to vector<8x48xbf16>
    %c0_5 = arith.constant 0 : index
    %c0_6 = arith.constant 0 : index
    %6 = vector.load %arg4[%c0_5, %c0_6] : memref<32x64xf32, #tpu.memory_space<vmem>>, vector<32x64xf32>
    %7 = arith.truncf %6 : vector<32x64xf32> to vector<32x64xbf16>
    %cst = arith.constant dense<0.000000e+00> : vector<8x64xf32>
    %8 = tpu.matmul %2, %7, %cst {dimension_numbers = #tpu.dot_dimension_numbers<[1], [0], [0], [1], [0, 0, 1, 1], [], []>} : vector<8x32xbf16>, vector<32x64xbf16>, vector<8x64xf32> -> vector<8x64xf32>
    %c0_7 = arith.constant 0 : index
    %c0_8 = arith.constant 0 : index
    %9 = vector.load %arg5[%c0_7, %c0_8] : memref<48x128xf32, #tpu.memory_space<vmem>>, vector<48x128xf32>
    %10 = arith.truncf %9 : vector<48x128xf32> to vector<48x128xbf16>
    %cst_9 = arith.constant dense<0.000000e+00> : vector<8x128xf32>
    %11 = tpu.matmul %5, %10, %cst_9 {dimension_numbers = #tpu.dot_dimension_numbers<[1], [0], [0], [1], [0, 0, 1, 1], [], []>} : vector<8x48xbf16>, vector<48x128xbf16>, vector<8x128xf32> -> vector<8x128xf32>
    %cst_10 = arith.constant 2.500000e-01 : f32
    %12 = vector.broadcast %cst_10 : f32 to vector<8x64xf32>
    %13 = arith.mulf %8, %12 : vector<8x64xf32>
    %14 = vector.extract_strided_slice %11 {offsets = [0, 0], sizes = [8, 64], strides = [1, 1]} : vector<8x128xf32> to vector<8x64xf32>
    %15 = vector.extract_strided_slice %11 {offsets = [0, 64], sizes = [8, 64], strides = [1, 1]} : vector<8x128xf32> to vector<8x64xf32>
    %16 = arith.truncf %13 : vector<8x64xf32> to vector<8x64xbf16>
    %17 = arith.truncf %14 : vector<8x64xf32> to vector<8x64xbf16>
    %18 = arith.truncf %15 : vector<8x64xf32> to vector<8x64xbf16>
    %19 = vector.extract_strided_slice %16 {offsets = [0, 0], sizes = [8, 16], strides = [1, 1]} : vector<8x64xbf16> to vector<8x16xbf16>
    %20 = vector.extract_strided_slice %17 {offsets = [0, 0], sizes = [8, 16], strides = [1, 1]} : vector<8x64xbf16> to vector<8x16xbf16>
    %21 = vector.extract_strided_slice %18 {offsets = [0, 0], sizes = [8, 16], strides = [1, 1]} : vector<8x64xbf16> to vector<8x16xbf16>
    %cst_11 = arith.constant dense<0.000000e+00> : vector<8x8xf32>
    %22 = tpu.matmul %19, %20, %cst_11 {dimension_numbers = #tpu.dot_dimension_numbers<[1], [1], [0], [0], [0, 0, 1, 0], [], []>} : vector<8x16xbf16>, vector<8x16xbf16>, vector<8x8xf32> -> vector<8x8xf32>
    %cst_12 = arith.constant dense<0xFF800000> : vector<8xf32>
    %23 = vector.multi_reduction <maximumf>, %22, %cst_12 [1] : vector<8x8xf32> to vector<8xf32>
    %24 = vector.shape_cast %23 : vector<8xf32> to vector<8x1xf32>
    %25 = vector.broadcast %24 : vector<8x1xf32> to vector<8x8xf32>
    %26 = arith.subf %22, %25 : vector<8x8xf32>
    %27 = math.exp %26 : vector<8x8xf32>
    %cst_13 = arith.constant dense<0.000000e+00> : vector<8xf32>
    %28 = vector.multi_reduction <add>, %27, %cst_13 [1] : vector<8x8xf32> to vector<8xf32>
    %29 = vector.shape_cast %28 : vector<8xf32> to vector<8x1xf32>
    %30 = arith.truncf %27 : vector<8x8xf32> to vector<8x8xbf16>
    %cst_14 = arith.constant dense<0.000000e+00> : vector<8x16xf32>
    %31 = tpu.matmul %30, %21, %cst_14 {dimension_numbers = #tpu.dot_dimension_numbers<[1], [0], [0], [1], [0, 0, 1, 1], [], []>} : vector<8x8xbf16>, vector<8x16xbf16>, vector<8x16xf32> -> vector<8x16xf32>
    %32 = tpu.reciprocal %29 {approx = true} : vector<8x1xf32> -> vector<8x1xf32>
    %33 = vector.broadcast %32 : vector<8x1xf32> to vector<8x16xf32>
    %34 = arith.mulf %31, %33 : vector<8x16xf32>
    %35 = vector.extract_strided_slice %16 {offsets = [0, 16], sizes = [8, 16], strides = [1, 1]} : vector<8x64xbf16> to vector<8x16xbf16>
    %36 = vector.extract_strided_slice %17 {offsets = [0, 16], sizes = [8, 16], strides = [1, 1]} : vector<8x64xbf16> to vector<8x16xbf16>
    %37 = vector.extract_strided_slice %18 {offsets = [0, 16], sizes = [8, 16], strides = [1, 1]} : vector<8x64xbf16> to vector<8x16xbf16>
    %cst_15 = arith.constant dense<0.000000e+00> : vector<8x8xf32>
    %38 = tpu.matmul %35, %36, %cst_15 {dimension_numbers = #tpu.dot_dimension_numbers<[1], [1], [0], [0], [0, 0, 1, 0], [], []>} : vector<8x16xbf16>, vector<8x16xbf16>, vector<8x8xf32> -> vector<8x8xf32>
    %cst_16 = arith.constant dense<0xFF800000> : vector<8xf32>
    %39 = vector.multi_reduction <maximumf>, %38, %cst_16 [1] : vector<8x8xf32> to vector<8xf32>
    %40 = vector.shape_cast %39 : vector<8xf32> to vector<8x1xf32>
    %41 = vector.broadcast %40 : vector<8x1xf32> to vector<8x8xf32>
    %42 = arith.subf %38, %41 : vector<8x8xf32>
    %43 = math.exp %42 : vector<8x8xf32>
    %cst_17 = arith.constant dense<0.000000e+00> : vector<8xf32>
    %44 = vector.multi_reduction <add>, %43, %cst_17 [1] : vector<8x8xf32> to vector<8xf32>
    %45 = vector.shape_cast %44 : vector<8xf32> to vector<8x1xf32>
    %46 = arith.truncf %43 : vector<8x8xf32> to vector<8x8xbf16>
    %cst_18 = arith.constant dense<0.000000e+00> : vector<8x16xf32>
    %47 = tpu.matmul %46, %37, %cst_18 {dimension_numbers = #tpu.dot_dimension_numbers<[1], [0], [0], [1], [0, 0, 1, 1], [], []>} : vector<8x8xbf16>, vector<8x16xbf16>, vector<8x16xf32> -> vector<8x16xf32>
    %48 = tpu.reciprocal %45 {approx = true} : vector<8x1xf32> -> vector<8x1xf32>
    %49 = vector.broadcast %48 : vector<8x1xf32> to vector<8x16xf32>
    %50 = arith.mulf %47, %49 : vector<8x16xf32>
    %51 = vector.extract_strided_slice %16 {offsets = [0, 32], sizes = [8, 16], strides = [1, 1]} : vector<8x64xbf16> to vector<8x16xbf16>
    %52 = vector.extract_strided_slice %17 {offsets = [0, 32], sizes = [8, 16], strides = [1, 1]} : vector<8x64xbf16> to vector<8x16xbf16>
    %53 = vector.extract_strided_slice %18 {offsets = [0, 32], sizes = [8, 16], strides = [1, 1]} : vector<8x64xbf16> to vector<8x16xbf16>
    %cst_19 = arith.constant dense<0.000000e+00> : vector<8x8xf32>
    %54 = tpu.matmul %51, %52, %cst_19 {dimension_numbers = #tpu.dot_dimension_numbers<[1], [1], [0], [0], [0, 0, 1, 0], [], []>} : vector<8x16xbf16>, vector<8x16xbf16>, vector<8x8xf32> -> vector<8x8xf32>
    %cst_20 = arith.constant dense<0xFF800000> : vector<8xf32>
    %55 = vector.multi_reduction <maximumf>, %54, %cst_20 [1] : vector<8x8xf32> to vector<8xf32>
    %56 = vector.shape_cast %55 : vector<8xf32> to vector<8x1xf32>
    %57 = vector.broadcast %56 : vector<8x1xf32> to vector<8x8xf32>
    %58 = arith.subf %54, %57 : vector<8x8xf32>
    %59 = math.exp %58 : vector<8x8xf32>
    %cst_21 = arith.constant dense<0.000000e+00> : vector<8xf32>
    %60 = vector.multi_reduction <add>, %59, %cst_21 [1] : vector<8x8xf32> to vector<8xf32>
    %61 = vector.shape_cast %60 : vector<8xf32> to vector<8x1xf32>
    %62 = arith.truncf %59 : vector<8x8xf32> to vector<8x8xbf16>
    %cst_22 = arith.constant dense<0.000000e+00> : vector<8x16xf32>
    %63 = tpu.matmul %62, %53, %cst_22 {dimension_numbers = #tpu.dot_dimension_numbers<[1], [0], [0], [1], [0, 0, 1, 1], [], []>} : vector<8x8xbf16>, vector<8x16xbf16>, vector<8x16xf32> -> vector<8x16xf32>
    %64 = tpu.reciprocal %61 {approx = true} : vector<8x1xf32> -> vector<8x1xf32>
    %65 = vector.broadcast %64 : vector<8x1xf32> to vector<8x16xf32>
    %66 = arith.mulf %63, %65 : vector<8x16xf32>
    %67 = vector.extract_strided_slice %16 {offsets = [0, 48], sizes = [8, 16], strides = [1, 1]} : vector<8x64xbf16> to vector<8x16xbf16>
    %68 = vector.extract_strided_slice %17 {offsets = [0, 48], sizes = [8, 16], strides = [1, 1]} : vector<8x64xbf16> to vector<8x16xbf16>
    %69 = vector.extract_strided_slice %18 {offsets = [0, 48], sizes = [8, 16], strides = [1, 1]} : vector<8x64xbf16> to vector<8x16xbf16>
    %cst_23 = arith.constant dense<0.000000e+00> : vector<8x8xf32>
    %70 = tpu.matmul %67, %68, %cst_23 {dimension_numbers = #tpu.dot_dimension_numbers<[1], [1], [0], [0], [0, 0, 1, 0], [], []>} : vector<8x16xbf16>, vector<8x16xbf16>, vector<8x8xf32> -> vector<8x8xf32>
    %cst_24 = arith.constant dense<0xFF800000> : vector<8xf32>
    %71 = vector.multi_reduction <maximumf>, %70, %cst_24 [1] : vector<8x8xf32> to vector<8xf32>
    %72 = vector.shape_cast %71 : vector<8xf32> to vector<8x1xf32>
    %73 = vector.broadcast %72 : vector<8x1xf32> to vector<8x8xf32>
    %74 = arith.subf %70, %73 : vector<8x8xf32>
    %75 = math.exp %74 : vector<8x8xf32>
    %cst_25 = arith.constant dense<0.000000e+00> : vector<8xf32>
    %76 = vector.multi_reduction <add>, %75, %cst_25 [1] : vector<8x8xf32> to vector<8xf32>
    %77 = vector.shape_cast %76 : vector<8xf32> to vector<8x1xf32>
    %78 = arith.truncf %75 : vector<8x8xf32> to vector<8x8xbf16>
    %cst_26 = arith.constant dense<0.000000e+00> : vector<8x16xf32>
    %79 = tpu.matmul %78, %69, %cst_26 {dimension_numbers = #tpu.dot_dimension_numbers<[1], [0], [0], [1], [0, 0, 1, 1], [], []>} : vector<8x8xbf16>, vector<8x16xbf16>, vector<8x16xf32> -> vector<8x16xf32>
    %80 = tpu.reciprocal %77 {approx = true} : vector<8x1xf32> -> vector<8x1xf32>
    %81 = vector.broadcast %80 : vector<8x1xf32> to vector<8x16xf32>
    %82 = arith.mulf %79, %81 : vector<8x16xf32>
    %83 = tpu.concatenate %34, %50, %66, %82 in 1 : vector<8x16xf32>, vector<8x16xf32>, vector<8x16xf32>, vector<8x16xf32> -> vector<8x64xf32>
    %84 = arith.truncf %83 : vector<8x64xf32> to vector<8x64xbf16>
    %c0_27 = arith.constant 0 : index
    %c0_28 = arith.constant 0 : index
    %85 = vector.load %arg6[%c0_27, %c0_28] : memref<64x32xf32, #tpu.memory_space<vmem>>, vector<64x32xf32>
    %86 = arith.truncf %85 : vector<64x32xf32> to vector<64x32xbf16>
    %cst_29 = arith.constant dense<0.000000e+00> : vector<8x32xf32>
    %87 = tpu.matmul %84, %86, %cst_29 {dimension_numbers = #tpu.dot_dimension_numbers<[1], [0], [0], [1], [0, 0, 1, 1], [], []>} : vector<8x64xbf16>, vector<64x32xbf16>, vector<8x32xf32> -> vector<8x32xf32>
    %c0_30 = arith.constant 0 : index
    %c0_31 = arith.constant 0 : index
    %88 = vector.load %arg7[%c0_30, %c0_31] : memref<1x32xf32, #tpu.memory_space<vmem>>, vector<1x32xf32>
    %89 = vector.broadcast %88 : vector<1x32xf32> to vector<8x32xf32>
    %90 = arith.addf %87, %89 : vector<8x32xf32>
    %c0_32 = arith.constant 0 : index
    %c0_33 = arith.constant 0 : index
    %c0_34 = arith.constant 0 : index
    %91 = vector.load %arg8[%c0_32, %c0_33, %c0_34] : memref<1x8x32xf32, #tpu.memory_space<vmem>>, vector<1x8x32xf32>
    %92 = vector.shape_cast %91 : vector<1x8x32xf32> to vector<8x32xf32>
    %93 = vector.shape_cast %90 : vector<8x32xf32> to vector<1x8x32xf32>
    tpu.vector_store %arg8[%c0_32, %c0_33, %c0_34], %93 {strides = array<i32>} : memref<1x8x32xf32, #tpu.memory_space<vmem>>, vector<1x8x32xf32>,
    return
  }
  func.func @transform_0(%arg0: i32, %arg1: i32) -> (i32, i32, i32) {
    %c0_i32 = arith.constant 0 : i32
    %c0_i32_0 = arith.constant 0 : i32
    return %arg0, %arg1, %c0_i32 : i32, i32, i32
  }
  func.func @transform_1(%arg0: i32, %arg1: i32) -> (i32, i32, i32) {
    %c0_i32 = arith.constant 0 : i32
    %c0_i32_0 = arith.constant 0 : i32
    %c0_i32_1 = arith.constant 0 : i32
    return %arg0, %c0_i32, %c0_i32_0 : i32, i32, i32
  }
  func.func @transform_2(%arg0: i32, %arg1: i32) -> (i32, i32) {
    %c0_i32 = arith.constant 0 : i32
    %c0_i32_0 = arith.constant 0 : i32
    %c0_i32_1 = arith.constant 0 : i32
    return %c0_i32, %c0_i32_0 : i32, i32
  }
  func.func @transform_3(%arg0: i32, %arg1: i32) -> (i32, i32) {
    %c0_i32 = arith.constant 0 : i32
    %c0_i32_0 = arith.constant 0 : i32
    %c0_i32_1 = arith.constant 0 : i32
    return %c0_i32, %c0_i32_0 : i32, i32
  }
  func.func @transform_4(%arg0: i32, %arg1: i32) -> (i32, i32) {
    %c0_i32 = arith.constant 0 : i32
    %c0_i32_0 = arith.constant 0 : i32
    %c0_i32_1 = arith.constant 0 : i32
    return %c0_i32, %c0_i32_0 : i32, i32
  }
  func.func @transform_5(%arg0: i32, %arg1: i32) -> (i32, i32) {
    %c0_i32 = arith.constant 0 : i32
    %c0_i32_0 = arith.constant 0 : i32
    %c0_i32_1 = arith.constant 0 : i32
    return %c0_i32, %c0_i32_0 : i32, i32
  }
  func.func @transform_6(%arg0: i32, %arg1: i32) -> (i32, i32, i32) {
    %c0_i32 = arith.constant 0 : i32
    %c0_i32_0 = arith.constant 0 : i32
    return %arg0, %arg1, %c0_i32 : i32, i32, i32
  }
}

</mosaic_0001>

<llo_original>
// kernel: tpu_custom_call.1
$region0: #{tpu_custom_call.1}
  #allocation0 [shape = 'u32[]', space=smem, size = 0x4, offset = 0x4, fixed_abs, tag = 'smem constant byte address 0x4 - core index']
  #allocation1 [shape = 'u32[72,128]{1,0:T(1,128)}', space=vmem, size = 0x9000, scoped, tag = 'internal scratch']
  %s0 = inlined_call_operand.vmem [shape: f32[2,8,32], index: 0, kind: input, shape index: {}]
  %s1 = inlined_call_operand.hbm [shape: f32[2,8,48], index: 1, kind: input, shape index: {}]
  %s2 = inlined_call_operand.vmem [shape: f32[32,64], index: 2, kind: input, shape index: {}]
  %s3 = inlined_call_operand.vmem [shape: f32[48,128], index: 3, kind: input, shape index: {}]
  %s4 = inlined_call_operand.vmem [shape: f32[64,32], index: 4, kind: input, shape index: {}]
  %s5 = inlined_call_operand.vmem [shape: f32[1,32], index: 5, kind: input, shape index: {}]
  %s6 = inlined_call_operand.hbm [shape: f32[2,8,32], index: 6, kind: output, shape index: {}]
  %s7 = sld [smem:[#allocation0]]
  $region61: #{tpu_custom_call.1} parent=0
    _
  %s9 = ssub.s32 1, %s7
  %s10 = scalar_select 0, %s9, %s7
  $region1: #{tpu_custom_call.1} parent=0
    #allocation2 [shape = 'u8[8192]{0}', space=vmem, size = 0x2000, scoped, tag = 'input window, operand 1']
    #allocation3 [shape = 's32[2]{0}', space=sflag, size = 0x8, scoped, tag = 'scoped memory for tpu_custom_call.1']
    #allocation4 [shape = 's32[2]{0}', space=sflag, size = 0x8, scoped, tag = 'scoped memory for tpu_custom_call.1']
    #allocation5 [shape = 'u8[8192]{0}', space=vmem, size = 0x2000, scoped, tag = 'output window, operand 0']
    %11 = vsyncpa [#allocation3], 0
    %s12 = scalar_lea.sflag [#allocation3], 1
    %13 = vsyncpa %s12, 0
    %14 = vsyncpa [#allocation4], 0
    %s15 = scalar_lea.sflag [#allocation4], 1
    %16 = vsyncpa %s15, 0
    loop: start=0, step=1, limit=4
    $region2: #{tpu_custom_call.1} parent=1 // loop_pre_header
      _
    $region3: #{tpu_custom_call.1} parent=1 // loop_header
      %s18 = sphi 0, %s22
      %p19 = scmp.ge.s32.totalorder %s18, 4
      %s25 = sphi 0, %s37
      %s26 = sphi 0, %s33
      %s27 = sphi 0, %s25
      %s28 = sphi 0, %s26
      %s29 = sphi 0, %s27
      %s30 = sphi 0, %s28
      %s42 = sphi 0, %s44
      %s45 = sphi 0, %s42
      %s46 = sphi 0, %s45
      %s62 = sphi 0, %s46
      %s68 = sphi 0, %s70
      %s71 = sphi 0, %s68
      %s72 = sphi 0, %s71
      %s88 = sphi 0, %s72
      %s92 = sphi 0, %s92
      %s94 = sphi 0, %s92
      %s95 = sphi 0, %s94
      %s109 = sphi 0, %s95
      %s113 = sphi 0, %s113
      %s115 = sphi 0, %s113
      %s116 = sphi 0, %s115
      %s130 = sphi 0, %s116
      %s134 = sphi 0, %s134
      %s136 = sphi 0, %s134
      %s137 = sphi 0, %s136
      %s151 = sphi 0, %s137
      %s155 = sphi 0, %s155
      %s157 = sphi 0, %s155
      %s158 = sphi 0, %s157
      %s172 = sphi 0, %s158
      %s180 = sphi 0, %s182
      %s183 = sphi 0, %s180
      %s184 = sphi 0, %s183
      %s200 = sphi 0, %s184
    $region4: #{tpu_custom_call.1} parent=1 // loop_header_branch
      %21 = sbr.rel (%p19) target = $region8
    $region5: #{tpu_custom_call.1} parent=1 // loop_body
      %s23 = ssub.s32 %s18, 1
      %s24 = ssub.s32 %s18, 2
      %s31 = sadd.s32 1, %s26
      %p32 = scmp.ge.s32.totalorder %s31, 1
      %s33 = scalar_select %p32, 0, %s31
      %s34 = sadd.s32 1, %s25
      %s35 = scalar_select %p32, %s34, %s25
      %p36 = scmp.ge.s32.totalorder %s35, 2
      %s37 = scalar_select %p36, 0, %s35
      %s38 = ssub.s32 %s25, %s37
      %s39 = ssub.s32 %s26, %s33
      %s40 = sor.u32 %s38, %s39
      %p41 = scmp.eq.s32.totalorder %s40, 0
      %s43 = sadd.s32 %s42, 1
      %s44 = scalar_select %p41, %s42, %s43
      %p47 = pneg %p41
      %p48 = scmp.eq.s32.totalorder %s18, 1
      %p49 = por %p47, %p48
      %p50 = scmp.ne.s32.totalorder %s42, %s45
      %p51 = scmp.eq.s32.totalorder %s18, 0
      %p52 = por %p50, %p51
      %p53 = scmp.ne.s32.totalorder %s42, %s45
      %p54 = scmp.eq.s32.totalorder %s23, 1
      %p55 = por %p53, %p54
      %p56 = scmp.ne.s32.totalorder %s45, %s46
      %p57 = scmp.eq.s32.totalorder %s23, 0
      %p58 = por %p56, %p57
      %p59 = scmp.ne.s32.totalorder %s45, %s46
      %p60 = scmp.eq.s32.totalorder %s24, 1
      %p61 = por %p59, %p60
      %p63 = scmp.ne.s32.totalorder %s46, %s62
      %p64 = scmp.eq.s32.totalorder %s24, 0
      %p65 = por %p63, %p64
      %s66 = ssub.s32 %s25, %s37
      %p67 = scmp.eq.s32.totalorder %s66, 0
      %s69 = sadd.s32 %s68, 1
      %s70 = scalar_select %p67, %s68, %s69
      %p73 = pneg %p67
      %p74 = scmp.eq.s32.totalorder %s18, 1
      %p75 = por %p73, %p74
      %p76 = scmp.ne.s32.totalorder %s68, %s71
      %p77 = scmp.eq.s32.totalorder %s18, 0
      %p78 = por %p76, %p77
      %p79 = scmp.ne.s32.totalorder %s68, %s71
      %p80 = scmp.eq.s32.totalorder %s23, 1
      %p81 = por %p79, %p80
      %p82 = scmp.ne.s32.totalorder %s71, %s72
      %p83 = scmp.eq.s32.totalorder %s23, 0
      %p84 = por %p82, %p83
      %p85 = scmp.ne.s32.totalorder %s71, %s72
      %p86 = scmp.eq.s32.totalorder %s24, 1
      %p87 = por %p85, %p86
      %p89 = scmp.ne.s32.totalorder %s72, %s88
      %p90 = scmp.eq.s32.totalorder %s24, 0
      %p91 = por %p89, %p90
      %s93 = sadd.s32 %s92, 1
      %p96 = scmp.eq.s32.totalorder %s18, 1
      %p97 = scmp.ne.s32.totalorder %s92, %s94
      %p98 = scmp.eq.s32.totalorder %s18, 0
      %p99 = por %p97, %p98
      %p100 = scmp.ne.s32.totalorder %s92, %s94
      %p101 = scmp.eq.s32.totalorder %s23, 1
      %p102 = por %p100, %p101
      %p103 = scmp.ne.s32.totalorder %s94, %s95
      %p104 = scmp.eq.s32.totalorder %s23, 0
      %p105 = por %p103, %p104
      %p106 = scmp.ne.s32.totalorder %s94, %s95
      %p107 = scmp.eq.s32.totalorder %s24, 1
      %p108 = por %p106, %p107
      %p110 = scmp.ne.s32.totalorder %s95, %s109
      %p111 = scmp.eq.s32.totalorder %s24, 0
      %p112 = por %p110, %p111
      %s114 = sadd.s32 %s113, 1
      %p117 = scmp.eq.s32.totalorder %s18, 1
      %p118 = scmp.ne.s32.totalorder %s113, %s115
      %p119 = scmp.eq.s32.totalorder %s18, 0
      %p120 = por %p118, %p119
      %p121 = scmp.ne.s32.totalorder %s113, %s115
      %p122 = scmp.eq.s32.totalorder %s23, 1
      %p123 = por %p121, %p122
      %p124 = scmp.ne.s32.totalorder %s115, %s116
      %p125 = scmp.eq.s32.totalorder %s23, 0
      %p126 = por %p124, %p125
      %p127 = scmp.ne.s32.totalorder %s115, %s116
      %p128 = scmp.eq.s32.totalorder %s24, 1
      %p129 = por %p127, %p128
      %p131 = scmp.ne.s32.totalorder %s116, %s130
      %p132 = scmp.eq.s32.totalorder %s24, 0
      %p133 = por %p131, %p132
      %s135 = sadd.s32 %s134, 1
      %p138 = scmp.eq.s32.totalorder %s18, 1
      %p139 = scmp.ne.s32.totalorder %s134, %s136
      %p140 = scmp.eq.s32.totalorder %s18, 0
      %p141 = por %p139, %p140
      %p142 = scmp.ne.s32.totalorder %s134, %s136
      %p143 = scmp.eq.s32.totalorder %s23, 1
      %p144 = por %p142, %p143
      %p145 = scmp.ne.s32.totalorder %s136, %s137
      %p146 = scmp.eq.s32.totalorder %s23, 0
      %p147 = por %p145, %p146
      %p148 = scmp.ne.s32.totalorder %s136, %s137
      %p149 = scmp.eq.s32.totalorder %s24, 1
      %p150 = por %p148, %p149
      %p152 = scmp.ne.s32.totalorder %s137, %s151
      %p153 = scmp.eq.s32.totalorder %s24, 0
      %p154 = por %p152, %p153
      %s156 = sadd.s32 %s155, 1
      %p159 = scmp.eq.s32.totalorder %s18, 1
      %p160 = scmp.ne.s32.totalorder %s155, %s157
      %p161 = scmp.eq.s32.totalorder %s18, 0
      %p162 = por %p160, %p161
      %p163 = scmp.ne.s32.totalorder %s155, %s157
      %p164 = scmp.eq.s32.totalorder %s23, 1
      %p165 = por %p163, %p164
      %p166 = scmp.ne.s32.totalorder %s157, %s158
      %p167 = scmp.eq.s32.totalorder %s23, 0
      %p168 = por %p166, %p167
      %p169 = scmp.ne.s32.totalorder %s157, %s158
      %p170 = scmp.eq.s32.totalorder %s24, 1
      %p171 = por %p169, %p170
      %p173 = scmp.ne.s32.totalorder %s158, %s172
      %p174 = scmp.eq.s32.totalorder %s24, 0
      %p175 = por %p173, %p174
      %s176 = ssub.s32 %s25, %s37
      %s177 = ssub.s32 %s26, %s33
      %s178 = sor.u32 %s176, %s177
      %p179 = scmp.eq.s32.totalorder %s178, 0
      %s181 = sadd.s32 %s180, 1
      %s182 = scalar_select %p179, %s180, %s181
      %p185 = pneg %p179
      %p186 = scmp.eq.s32.totalorder %s18, 1
      %p187 = por %p185, %p186
      %p188 = scmp.ne.s32.totalorder %s180, %s183
      %p189 = scmp.eq.s32.totalorder %s18, 0
      %p190 = por %p188, %p189
      %p191 = scmp.ne.s32.totalorder %s180, %s183
      %p192 = scmp.eq.s32.totalorder %s23, 1
      %p193 = por %p191, %p192
      %p194 = scmp.ne.s32.totalorder %s183, %s184
      %p195 = scmp.eq.s32.totalorder %s23, 0
      %p196 = por %p194, %p195
      %p197 = scmp.ne.s32.totalorder %s183, %s184
      %p198 = scmp.eq.s32.totalorder %s24, 1
      %p199 = por %p197, %p198
      %p201 = scmp.ne.s32.totalorder %s184, %s200
      %p202 = scmp.eq.s32.totalorder %s24, 0
      %p203 = por %p201, %p202
      %p204 = scmp.le.s32.totalorder 1, %s18
      %p205 = scmp.lt.s32.totalorder %s18, 3
      %p206 = pnand %p204, %p205
      %p207 = pneg %p206
      // Predicated region
      $region9: #{tpu_custom_call.1} parent=5 // pred_check
        _
      $region10: #{tpu_custom_call.1} parent=5 // pred_check_branch
        %209 = sbr.rel (%p206) target = $region12
      $region11: #{tpu_custom_call.1} parent=5 // pred_region
        %s210 = ssub.s32 %s18, 1
        // Predicated region
        $region13: #{tpu_custom_call.1} parent=11 // pred_check
          %p211 = pneg %p105
        $region14: #{tpu_custom_call.1} parent=11 // pred_check_branch
          %213 = sbr.rel (%p211) target = $region16
        $region15: #{tpu_custom_call.1} parent=11 // pred_region
          _
        $region16: #{tpu_custom_call.1} parent=11 // pred_fallthru
          _
        // Predicated region
        $region17: #{tpu_custom_call.1} parent=11 // pred_check
          %p214 = pneg %p126
        $region18: #{tpu_custom_call.1} parent=11 // pred_check_branch
          %216 = sbr.rel (%p214) target = $region20
        $region19: #{tpu_custom_call.1} parent=11 // pred_region
          _
        $region20: #{tpu_custom_call.1} parent=11 // pred_fallthru
          _
        // Predicated region
        $region21: #{tpu_custom_call.1} parent=11 // pred_check
          %p217 = pneg %p147
        $region22: #{tpu_custom_call.1} parent=11 // pred_check_branch
          %219 = sbr.rel (%p217) target = $region24
        $region23: #{tpu_custom_call.1} parent=11 // pred_region
          _
        $region24: #{tpu_custom_call.1} parent=11 // pred_fallthru
          _
        // Predicated region
        $region25: #{tpu_custom_call.1} parent=11 // pred_check
          %p220 = pneg %p168
        $region26: #{tpu_custom_call.1} parent=11 // pred_check_branch
          %222 = sbr.rel (%p220) target = $region28
        $region27: #{tpu_custom_call.1} parent=11 // pred_region
          _
        $region28: #{tpu_custom_call.1} parent=11 // pred_fallthru
          _
      $region12: #{tpu_custom_call.1} parent=5 // pred_fallthru
        _
      %p223 = scmp.lt.s32.totalorder %s18, 2
      // Predicated region
      $region29: #{tpu_custom_call.1} parent=5 // pred_check
        %p224 = pneg %p223
      $region30: #{tpu_custom_call.1} parent=5 // pred_check_branch
        %226 = sbr.rel (%p224) target = $region32
      $region31: #{tpu_custom_call.1} parent=5 // pred_region
        // Predicated region
        $region33: #{tpu_custom_call.1} parent=31 // pred_check
          %p227 = pneg %p52
        $region34: #{tpu_custom_call.1} parent=31 // pred_check_branch
          %229 = sbr.rel (%p227) target = $region36
        $region35: #{tpu_custom_call.1} parent=31 // pred_region
          %p230 = scmp.lt.s32.totalorder %s25, 1
          %s231 = scalar_select %p230, %s25, 1
          %p232 = scmp.lt.s32.totalorder %s26, 0
          %s233 = scalar_select %p232, %s26, 0
          %s234 = sadd.s32 %s233, %s231
          %s235 = smul.addr %s234, 8
          %s236 = scalar_lea.vmem %s0, %s235
        $region36: #{tpu_custom_call.1} parent=31 // pred_fallthru
          _
        // Predicated region
        $region37: #{tpu_custom_call.1} parent=31 // pred_check
          %p237 = pneg %p78
        $region38: #{tpu_custom_call.1} parent=31 // pred_check_branch
          %239 = sbr.rel (%p237) target = $region40
        $region39: #{tpu_custom_call.1} parent=31 // pred_region
          %s240 = sand.u32 %s68, 1
          %s241 = scalar_lea.sflag [#allocation3], %s240
          %s242 = sand.u32 %s68, 1
          %s243 = smul.addr %s242, 8
          %s244 = scalar_lea.vmem [#allocation2], %s243
          %246 = vsyncadd %s241, 0
          %s247 = smul.addr %s25, 8
          %s248 = scalar_lea.hbm %s1, %s247
          %s250 = sshll.u32 %s248, 4
          %s251 = int_to_ptr.hbm [resolvable:$true] %s250
          %s252 = sshll.u32 %s244, 4
          %s253 = int_to_ptr.vmem [resolvable:$true] %s252
          %255 = dma.hbm_to_vmem [thread:$0]  %s251, 128, %s253, %s241
        $region40: #{tpu_custom_call.1} parent=31 // pred_fallthru
          _
      $region32: #{tpu_custom_call.1} parent=5 // pred_fallthru
        _
      %p256 = scmp.le.s32.totalorder 1, %s18
      %p257 = scmp.lt.s32.totalorder %s18, 3
      %p258 = pnand %p256, %p257
      %p259 = pneg %p258
      // Predicated region
      $region41: #{tpu_custom_call.1} parent=5 // pred_check
        _
      $region42: #{tpu_custom_call.1} parent=5 // pred_check_branch
        %261 = sbr.rel (%p258) target = $region44
      $region43: #{tpu_custom_call.1} parent=5 // pred_region
        %s262 = ssub.s32 %s18, 1
        %s263 = sand.u32 %s71, 1
        %s264 = scalar_lea.sflag [#allocation3], %s263
        %s265 = sand.u32 %s71, 1
        %s266 = smul.addr %s265, 8
        %s267 = scalar_lea.vmem [#allocation2], %s266
        // Predicated region
        $region45: #{tpu_custom_call.1} parent=43 // pred_check
          %p268 = pneg %p84
        $region46: #{tpu_custom_call.1} parent=43 // pred_check_branch
          %270 = sbr.rel (%p268) target = $region48
        $region47: #{tpu_custom_call.1} parent=43 // pred_region
          %272 = dma.done %s264, 128
        $region48: #{tpu_custom_call.1} parent=43 // pred_fallthru
          _
        %p273 = scmp.lt.s32.totalorder %s27, 1
        %s274 = scalar_select %p273, %s27, 1
        %p275 = scmp.lt.s32.totalorder %s28, 0
        %s276 = scalar_select %p275, %s28, 0
        %s277 = sadd.s32 %s276, %s274
        %s278 = smul.addr %s277, 8
        %s279 = scalar_lea.vmem %s0, %s278
        %p280 = pneg %p58
        %p281 = pneg %p55
        %s282 = sand.u32 %s71, 1
        %s283 = scalar_lea.sflag [#allocation3], %s282
        %s284 = sand.u32 %s71, 1
        %s285 = smul.addr %s284, 8
        %s286 = scalar_lea.vmem [#allocation2], %s285
        %p287 = pneg %p84
        %p288 = pneg %p81
        %p289 = pneg %p105
        %p290 = pneg %p102
        %p291 = pneg %p126
        %p292 = pneg %p123
        %p293 = pneg %p147
        %p294 = pneg %p144
        %p295 = pneg %p168
        %p296 = pneg %p165
        %p297 = pneg %p196
        %p298 = pneg %p193
        %s299 = sand.u32 %s183, 1
        %s300 = scalar_lea.sflag [#allocation4], %s299
        %s301 = sand.u32 %s183, 1
        %s302 = smul.addr %s301, 8
        %s303 = scalar_lea.vmem [#allocation5], %s302
        %p304 = scmp.lt.s32.totalorder %s27, 1
        %s305 = scalar_select %p304, %s27, 1
        %p306 = scmp.lt.s32.totalorder %s28, 0
        %s307 = scalar_select %p306, %s28, 0
        %s308 = sadd.s32 %s307, %s305
        %s309 = smul.addr %s308, 8
        %s310 = scalar_lea.vmem %s0, %s309
        %v312 = vld [vmem:[%s310] sm:$0xff]
        %v313 = vpack.c.bf16 %v312, %v312
        %v314 = vld [vmem:[%s267] sm:$0xff]
        %v315 = vpack.c.bf16 %v314, %v314
        %v316 = vld [vmem:[%s2] sm:$0xff]
        %v317 = vld [vmem:[%s2 + $0x8] sm:$0xff]
        %v318 = vld [vmem:[%s2 + $0x10] sm:$0xff]
        %v319 = vld [vmem:[%s2 + $0x18] sm:$0xff]
        %v320 = vpack.c.bf16 %v317, %v316
        %v321 = vpack.c.bf16 %v319, %v318
        %vm322 = vcmask 261120
        %v324 = vsel %vm322, %v313, 0
        %326 = vmatpush.bf16.msra.mxu0 0
        %327 = vmatpush.bf16.msra.mxu0 0
        %328 = vmatpush.bf16.msra.mxu0 0
        %329 = vmatpush.bf16.msra.mxu0 0
        %330 = vmatpush.bf16.msra.mxu0 0
        %331 = vmatpush.bf16.msra.mxu0 0
        %332 = vmatpush.bf16.msra.mxu0 %v321
        %333 = vmatpush.bf16.msra.mxu0 %v320
        %334 = vmatmul.bf16.gmra.mxu0 %v324
        %v335 = vpop.f32.mrf.mxu0
        %v336 = vadd.f32 0.0, %v335
        %v337 = vpop.f32.mrf.mxu0
        %338 = vdwg.mxu0
        %v339 = vld [vmem:[%s3] sm:$0xff]
        %v340 = vld [vmem:[%s3 + $0x8] sm:$0xff]
        %v341 = vld [vmem:[%s3 + $0x10] sm:$0xff]
        %v342 = vld [vmem:[%s3 + $0x18] sm:$0xff]
        %v343 = vld [vmem:[%s3 + $0x20] sm:$0xff]
        %v344 = vld [vmem:[%s3 + $0x28] sm:$0xff]
        %v345 = vpack.c.bf16 %v340, %v339
        %v346 = vpack.c.bf16 %v342, %v341
        %v347 = vpack.c.bf16 %v344, %v343
        %vm348 = vcmask 392192
        %v350 = vsel %vm348, %v315, 0
        %352 = vmatpush.bf16.msra.mxu0 0
        %353 = vmatpush.bf16.msra.mxu0 0
        %354 = vmatpush.bf16.msra.mxu0 0
        %355 = vmatpush.bf16.msra.mxu0 0
        %356 = vmatpush.bf16.msra.mxu0 0
        %357 = vmatpush.bf16.msra.mxu0 %v347
        %358 = vmatpush.bf16.msra.mxu0 %v346
        %359 = vmatpush.bf16.msra.mxu0 %v345
        %360 = vmatmul.bf16.gmra.mxu0 %v350
        %v361 = vpop.f32.mrf.mxu0
        %v362 = vadd.f32 0.0, %v361
        %v363 = vpop.f32.mrf.mxu0
        %364 = vdwg.mxu0
        %v365 = vmul.f32 %v336, 0.25
        %v366 = vpack.c.bf16 %v365, %v365
        %v367 = vpack.c.bf16 %v362, %v362
        %vm368 = vcmask 130048
        %v370 = vsel %vm368, %v366, 0
        %v373 = vsel %vm368, %v367, 0
        %375 = vmatpush.bf16.xpose.msra.mxu0 0
        %376 = vmatpush.bf16.xpose.msra.mxu0 0
        %377 = vmatpush.bf16.xpose.msra.mxu0 0
        %378 = vmatpush.bf16.xpose.msra.mxu0 0
        %379 = vmatpush.bf16.xpose.msra.mxu0 0
        %380 = vmatpush.bf16.xpose.msra.mxu0 0
        %381 = vmatpush.bf16.xpose.msra.mxu0 0
        %382 = vmatpush.bf16.xpose.msra.mxu0 %v373
        %383 = vmatmul.bf16.gmra.mxu0 %v370
        %v384 = vpop.f32.mrf.mxu0
        %v385 = vadd.f32 0.0, %v384
        %v386 = vpop.f32.mrf.mxu0
        %387 = vdwg.mxu0
        %vm388 = vcmask 64512
        %v389 = vsel %vm388, %v385, -inf
        %390 = vmax.xlane.f32.xlu0 %v389
        %v391 = vpop.xlane.xlu0 %390
        %v392 = vsub.f32 %v385, %v391
        %v393 = vmul.f32 %v392, 1.442695
        %v394 = vpow.pop %v393
        %v395 = vsel %vm388, %v394, 0.0
        %396 = vadd.xlane.f32.xlu0 %v395
        %v397 = vpop.xlane.xlu0 %396
        %v398 = vpack.c.bf16 %v394, %v394
        %v400 = vunpack.c.l.b16 %v367
        %v401 = vpack.c.b16 %v400, %v400
        %402 = vrot.lane.b32.xlu0 %v401, 64
        %v403 = vpop.permute.xlu0 %402
        %v405 = vsel %vm388, %v398, 0
        %vm407 = vcmask 1043456
        %v409 = vsel %vm407, %v403, 0
        %411 = vmatpush.bf16.msra.mxu0 0
        %412 = vmatpush.bf16.msra.mxu0 0
        %413 = vmatpush.bf16.msra.mxu0 0
        %414 = vmatpush.bf16.msra.mxu0 0
        %415 = vmatpush.bf16.msra.mxu0 0
        %416 = vmatpush.bf16.msra.mxu0 0
        %417 = vmatpush.bf16.msra.mxu0 0
        %418 = vmatpush.bf16.msra.mxu0 %v409
        %419 = vmatmul.bf16.gmra.mxu0 %v405
        %v420 = vpop.f32.mrf.mxu0
        %v421 = vadd.f32 0.0, %v420
        %v422 = vpop.f32.mrf.mxu0
        %423 = vdwg.mxu0
        %v424 = vrcp.pop %v397
        %v425 = vmul.f32 %v421, %v424
        %v427 = vunpack.c.l.b16 %v366
        %v428 = vpack.c.b16 %v427, %v427
        %429 = vrot.lane.b32.xlu0 %v428, 112
        %v430 = vpop.permute.xlu0 %429
        %431 = vrot.lane.b32.xlu0 %v401, 112
        %v432 = vpop.permute.xlu0 %431
        %v434 = vsel %vm368, %v430, 0
        %v437 = vsel %vm368, %v432, 0
        %439 = vmatpush.bf16.xpose.msra.mxu0 0
        %440 = vmatpush.bf16.xpose.msra.mxu0 0
        %441 = vmatpush.bf16.xpose.msra.mxu0 0
        %442 = vmatpush.bf16.xpose.msra.mxu0 0
        %443 = vmatpush.bf16.xpose.msra.mxu0 0
        %444 = vmatpush.bf16.xpose.msra.mxu0 0
        %445 = vmatpush.bf16.xpose.msra.mxu0 0
        %446 = vmatpush.bf16.xpose.msra.mxu0 %v437
        %447 = vmatmul.bf16.gmra.mxu0 %v434
        %v448 = vpop.f32.mrf.mxu0
        %v449 = vadd.f32 0.0, %v448
        %v450 = vpop.f32.mrf.mxu0
        %451 = vdwg.mxu0
        %v452 = vsel %vm388, %v449, -inf
        %453 = vmax.xlane.f32.xlu0 %v452
        %v454 = vpop.xlane.xlu0 %453
        %v455 = vsub.f32 %v449, %v454
        %v456 = vmul.f32 %v455, 1.442695
        %v457 = vpow.pop %v456
        %v458 = vsel %vm388, %v457, 0.0
        %459 = vadd.xlane.f32.xlu0 %v458
        %v460 = vpop.xlane.xlu0 %459
        %v461 = vpack.c.bf16 %v457, %v457
        %462 = vrot.lane.b32.xlu0 %v401, 48
        %v463 = vpop.permute.xlu0 %462
        %v465 = vsel %vm388, %v461, 0
        %v468 = vsel %vm407, %v463, 0
        %470 = vmatpush.bf16.msra.mxu0 0
        %471 = vmatpush.bf16.msra.mxu0 0
        %472 = vmatpush.bf16.msra.mxu0 0
        %473 = vmatpush.bf16.msra.mxu0 0
        %474 = vmatpush.bf16.msra.mxu0 0
        %475 = vmatpush.bf16.msra.mxu0 0
        %476 = vmatpush.bf16.msra.mxu0 0
        %477 = vmatpush.bf16.msra.mxu0 %v468
        %478 = vmatmul.bf16.gmra.mxu0 %v465
        %v479 = vpop.f32.mrf.mxu0
        %v480 = vadd.f32 0.0, %v479
        %v481 = vpop.f32.mrf.mxu0
        %482 = vdwg.mxu0
        %v483 = vrcp.pop %v460
        %v484 = vmul.f32 %v480, %v483
        %485 = vrot.lane.b32.xlu0 %v428, 96
        %v486 = vpop.permute.xlu0 %485
        %487 = vrot.lane.b32.xlu0 %v401, 96
        %v488 = vpop.permute.xlu0 %487
        %v490 = vsel %vm368, %v486, 0
        %v493 = vsel %vm368, %v488, 0
        %495 = vmatpush.bf16.xpose.msra.mxu0 0
        %496 = vmatpush.bf16.xpose.msra.mxu0 0
        %497 = vmatpush.bf16.xpose.msra.mxu0 0
        %498 = vmatpush.bf16.xpose.msra.mxu0 0
        %499 = vmatpush.bf16.xpose.msra.mxu0 0
        %500 = vmatpush.bf16.xpose.msra.mxu0 0
        %501 = vmatpush.bf16.xpose.msra.mxu0 0
        %502 = vmatpush.bf16.xpose.msra.mxu0 %v493
        %503 = vmatmul.bf16.gmra.mxu0 %v490
        %v504 = vpop.f32.mrf.mxu0
        %v505 = vadd.f32 0.0, %v504
        %v506 = vpop.f32.mrf.mxu0
        %507 = vdwg.mxu0
        %v508 = vsel %vm388, %v505, -inf
        %509 = vmax.xlane.f32.xlu0 %v508
        %v510 = vpop.xlane.xlu0 %509
        %v511 = vsub.f32 %v505, %v510
        %v512 = vmul.f32 %v511, 1.442695
        %v513 = vpow.pop %v512
        %v514 = vsel %vm388, %v513, 0.0
        %515 = vadd.xlane.f32.xlu0 %v514
        %v516 = vpop.xlane.xlu0 %515
        %v517 = vpack.c.bf16 %v513, %v513
        %518 = vrot.lane.b32.xlu0 %v401, 32
        %v519 = vpop.permute.xlu0 %518
        %v521 = vsel %vm388, %v517, 0
        %v524 = vsel %vm407, %v519, 0
        %526 = vmatpush.bf16.msra.mxu0 0
        %527 = vmatpush.bf16.msra.mxu0 0
        %528 = vmatpush.bf16.msra.mxu0 0
        %529 = vmatpush.bf16.msra.mxu0 0
        %530 = vmatpush.bf16.msra.mxu0 0
        %531 = vmatpush.bf16.msra.mxu0 0
        %532 = vmatpush.bf16.msra.mxu0 0
        %533 = vmatpush.bf16.msra.mxu0 %v524
        %534 = vmatmul.bf16.gmra.mxu0 %v521
        %v535 = vpop.f32.mrf.mxu0
        %v536 = vadd.f32 0.0, %v535
        %v537 = vpop.f32.mrf.mxu0
        %538 = vdwg.mxu0
        %v539 = vrcp.pop %v516
        %v540 = vmul.f32 %v536, %v539
        %541 = vrot.lane.b32.xlu0 %v428, 80
        %v542 = vpop.permute.xlu0 %541
        %543 = vrot.lane.b32.xlu0 %v401, 80
        %v544 = vpop.permute.xlu0 %543
        %v546 = vsel %vm368, %v542, 0
        %v549 = vsel %vm368, %v544, 0
        %551 = vmatpush.bf16.xpose.msra.mxu0 0
        %552 = vmatpush.bf16.xpose.msra.mxu0 0
        %553 = vmatpush.bf16.xpose.msra.mxu0 0
        %554 = vmatpush.bf16.xpose.msra.mxu0 0
        %555 = vmatpush.bf16.xpose.msra.mxu0 0
        %556 = vmatpush.bf16.xpose.msra.mxu0 0
        %557 = vmatpush.bf16.xpose.msra.mxu0 0
        %558 = vmatpush.bf16.xpose.msra.mxu0 %v549
        %559 = vmatmul.bf16.gmra.mxu0 %v546
        %v560 = vpop.f32.mrf.mxu0
        %v561 = vadd.f32 0.0, %v560
        %v562 = vpop.f32.mrf.mxu0
        %563 = vdwg.mxu0
        %v564 = vsel %vm388, %v561, -inf
        %565 = vmax.xlane.f32.xlu0 %v564
        %v566 = vpop.xlane.xlu0 %565
        %v567 = vsub.f32 %v561, %v566
        %v568 = vmul.f32 %v567, 1.442695
        %v569 = vpow.pop %v568
        %v570 = vsel %vm388, %v569, 0.0
        %571 = vadd.xlane.f32.xlu0 %v570
        %v572 = vpop.xlane.xlu0 %571
        %v573 = vpack.c.bf16 %v569, %v569
        %574 = vrot.lane.b32.xlu0 %v401, 16
        %v575 = vpop.permute.xlu0 %574
        %v577 = vsel %vm388, %v573, 0
        %v580 = vsel %vm407, %v575, 0
        %582 = vmatpush.bf16.msra.mxu0 0
        %583 = vmatpush.bf16.msra.mxu0 0
        %584 = vmatpush.bf16.msra.mxu0 0
        %585 = vmatpush.bf16.msra.mxu0 0
        %586 = vmatpush.bf16.msra.mxu0 0
        %587 = vmatpush.bf16.msra.mxu0 0
        %588 = vmatpush.bf16.msra.mxu0 0
        %589 = vmatpush.bf16.msra.mxu0 %v580
        %590 = vmatmul.bf16.gmra.mxu0 %v577
        %v591 = vpop.f32.mrf.mxu0
        %v592 = vadd.f32 0.0, %v591
        %v593 = vpop.f32.mrf.mxu0
        %594 = vdwg.mxu0
        %v595 = vrcp.pop %v572
        %v596 = vmul.f32 %v592, %v595
        %598 = vrot.lane.b32.xlu0 %v484, 16
        %v599 = vpop.permute.xlu0 %598
        %602 = vrot.lane.b32.xlu0 %v540, 32
        %v603 = vpop.permute.xlu0 %602
        %606 = vrot.lane.b32.xlu0 %v596, 48
        %v607 = vpop.permute.xlu0 %606
        %v609 = vsel %vm368, %v425, %v599
        %v610 = vsel %vm322, %v609, %v603
        %v611 = vsel %vm348, %v610, %v607
        %v612 = vpack.c.bf16 %v611, %v611
        %v613 = vld [vmem:[%s4] sm:$0xff]
        %v614 = vld [vmem:[%s4 + $0x8] sm:$0xff]
        %v615 = vld [vmem:[%s4 + $0x10] sm:$0xff]
        %v616 = vld [vmem:[%s4 + $0x18] sm:$0xff]
        %v617 = vld [vmem:[%s4 + $0x20] sm:$0xff]
        %v618 = vld [vmem:[%s4 + $0x28] sm:$0xff]
        %v619 = vld [vmem:[%s4 + $0x30] sm:$0xff]
        %v620 = vld [vmem:[%s4 + $0x38] sm:$0xff]
        %v621 = vpack.c.bf16 %v614, %v613
        %v622 = vpack.c.bf16 %v616, %v615
        %v623 = vpack.c.bf16 %v618, %v617
        %v624 = vpack.c.bf16 %v620, %v619
        %v625 = vld [vmem:[%s5] sm:$0x1]
        %v627 = vperm.slane %v625, 0
        %vm629 = vcmask 523264
        %v631 = vsel %vm629, %v612, 0
        %633 = vmatpush.bf16.msra.mxu0 0
        %634 = vmatpush.bf16.msra.mxu0 0
        %635 = vmatpush.bf16.msra.mxu0 0
        %636 = vmatpush.bf16.msra.mxu0 0
        %637 = vmatpush.bf16.msra.mxu0 %v624
        %638 = vmatpush.bf16.msra.mxu0 %v623
        %639 = vmatpush.bf16.msra.mxu0 %v622
        %640 = vmatpush.bf16.msra.mxu0 %v621
        %641 = vmatmul.bf16.gmra.mxu0 %v631
        %v642 = vpop.f32.mrf.mxu0
        %v643 = vadd.f32 %v627, %v642
        %v644 = vpop.f32.mrf.mxu0
        %645 = vdwg.mxu0
        %646 = vst.msk [vmem:[%s303] sm:$0xff] %vm322, %v643
        %s647 = sand.u32 %s183, 1
        %s648 = scalar_lea.sflag [#allocation4], %s647
        %s649 = sand.u32 %s183, 1
        %s650 = smul.addr %s649, 8
        %s651 = scalar_lea.vmem [#allocation5], %s650
        // Predicated region
        $region49: #{tpu_custom_call.1} parent=43 // pred_check
          %p652 = pneg %p193
        $region50: #{tpu_custom_call.1} parent=43 // pred_check_branch
          %654 = sbr.rel (%p652) target = $region52
        $region51: #{tpu_custom_call.1} parent=43 // pred_region
          %656 = vsyncadd %s648, 0
          %s657 = sadd.s32 %s28, %s27
          %s658 = smul.addr %s657, 8
          %s659 = scalar_lea.hbm %s6, %s658
          %s661 = sshll.u32 %s651, 4
          %s662 = int_to_ptr.vmem [resolvable:$true] %s661
          %s663 = sshll.u32 %s659, 4
          %s664 = int_to_ptr.hbm [resolvable:$true] %s663
          %666 = dma.vmem_to_hbm [thread:$0]  %s662, 128, %s664, %s648
        $region52: #{tpu_custom_call.1} parent=43 // pred_fallthru
          _
      $region44: #{tpu_custom_call.1} parent=5 // pred_fallthru
        _
      %p667 = scmp.le.s32.totalorder 2, %s18
      // Predicated region
      $region53: #{tpu_custom_call.1} parent=5 // pred_check
        %p668 = pneg %p667
      $region54: #{tpu_custom_call.1} parent=5 // pred_check_branch
        %670 = sbr.rel (%p668) target = $region56
      $region55: #{tpu_custom_call.1} parent=5 // pred_region
        %s671 = ssub.s32 %s18, 2
        // Predicated region
        $region57: #{tpu_custom_call.1} parent=55 // pred_check
          %p672 = pneg %p199
        $region58: #{tpu_custom_call.1} parent=55 // pred_check_branch
          %674 = sbr.rel (%p672) target = $region60
        $region59: #{tpu_custom_call.1} parent=55 // pred_region
          %s675 = sand.u32 %s184, 1
          %s676 = scalar_lea.sflag [#allocation4], %s675
          %s677 = sand.u32 %s184, 1
          %s678 = smul.addr %s677, 8
          %s679 = scalar_lea.vmem [#allocation5], %s678
          %681 = dma.done %s676, 128
        $region60: #{tpu_custom_call.1} parent=55 // pred_fallthru
          _
      $region56: #{tpu_custom_call.1} parent=5 // pred_fallthru
        _
    $region6: #{tpu_custom_call.1} parent=1 // loop_footer
      %s22 = sadd.s32 1, %s18
    $region7: #{tpu_custom_call.1} parent=1 // loop_footer_branch
      %17 = sbr.rel target = $region3
    $region8: #{tpu_custom_call.1} parent=1 // loop_exit
      _
    %682 = vsyncpa [#allocation3], 1
    %s683 = scalar_lea.sflag [#allocation3], 1
    %684 = vsyncpa %s683, 1
    %685 = vsyncpa [#allocation4], 1
    %s686 = scalar_lea.sflag [#allocation4], 1
    %687 = vsyncpa %s686, 1

</llo_original>
